<compile_context>
chip_gen: v7x
topology: tpu7x:2x2x1
jax: 0.10.0
libtpu: 0.0.40
codegen_flags: <defaults>
</compile_context>

<pallas_src>
import functools

import jax
import jax.numpy as jnp
from jax.experimental import pallas as pl
from jax.experimental.pallas import tpu as pltpu


def _round_up(x, m):
    return ((x + m - 1) // m) * m


def _cdiv(a, b):
    return (a + b - 1) // b


def _vmem_budget_bytes():
    """(usable budget for our tiles, physical capacity) in bytes."""
    try:
        cap = int(pltpu.get_tpu_info().vmem_capacity_bytes)
    except Exception:
        cap = 64 * 1024 * 1024  # conservative default (v7x per-TensorCore)
    return (cap * 3) // 4, cap


def _fused_kernel(bias_ref, z_ref, w_ref, o_ref):
    # z_ref: (tm, K), w_ref: (tn_or_full, K). Contract the last axes of both
    # tiles (== z @ w.T) so the MXU is fed directly, no XLU transpose of W.
    acc = jax.lax.dot_general(
        z_ref[...],
        w_ref[...],
        dimension_numbers=(((1,), (1,)), ((), ())),
        preferred_element_type=jnp.float32,
    )
    o_ref[...] = jnp.maximum(acc + bias_ref[0], 0.0).astype(o_ref.dtype)


def _acc_kernel(bias_ref, z_ref, w_ref, o_ref, acc_ref):
    # Classic K-innermost accumulator: zero at k==0, bias+relu+store at k==last.
    @pl.when(pl.program_id(2) == 0)
    def _():
        acc_ref[...] = jnp.zeros_like(acc_ref)

    acc_ref[...] += jax.lax.dot_general(
        z_ref[...],
        w_ref[...],
        dimension_numbers=(((1,), (1,)), ((), ())),
        preferred_element_type=jnp.float32,
    )

    @pl.when(pl.program_id(2) == pl.num_programs(2) - 1)
    def _():
        o_ref[...] = jnp.maximum(acc_ref[...] + bias_ref[0], 0.0).astype(o_ref.dtype)


@functools.partial(jax.jit, static_argnames=("use_bf16",))
def mlp_encode_old(z_half, weight, lambd=0.1, *, use_bf16=False):
    """relu(lambd/2 + z_half @ weight.T) via Pallas.

    z_half: (..., dim), weight: (dim, dim).
    """
    orig_shape = z_half.shape
    out_dtype = z_half.dtype
    dim = orig_shape[-1]
    assert weight.shape == (dim, dim)

    z2d = z_half.reshape(-1, dim)
    M = z2d.shape[0]

    # ---- feature-axis padding: only when required for lane alignment -------
    d_pad = _round_up(dim, 128)
    if d_pad != dim:
        # Zero-pad the contraction axis (correctness) and W's output-feature
        # axis (lane-dense output); padded output columns sliced off below.
        z2d = jnp.pad(z2d, ((0, 0), (0, d_pad - dim)))
        w_p = jnp.pad(weight, ((0, d_pad - dim), (0, d_pad - dim)))
    else:
        w_p = weight
    # NOTE: for repeated calls with small M, pre-pad / pre-cast the weight once
    # outside this function and pass it in already at (d_pad, d_pad).

    if use_bf16:
        z2d = z2d.astype(jnp.bfloat16)
        w_p = w_p.astype(jnp.bfloat16)
    bpe_in = jnp.dtype(z2d.dtype).itemsize
    bpe_out = jnp.dtype(out_dtype).itemsize

    half_lambd = (jnp.asarray(lambd, dtype=jnp.float32) * 0.5).reshape((1,))

    vmem_budget, vmem_cap = _vmem_budget_bytes()
    vmem_limit = int(min((vmem_cap * 7) // 8, vmem_budget + (16 << 20)))

    smem_spec = pl.BlockSpec(memory_space=pltpu.MemorySpace.SMEM)
    flops = 2 * M * d_pad * d_pad

    # ---- Path A: weight fully resident in VMEM (DMA'd once, no K grid) -----
    w_resident_bytes = 2 * d_pad * d_pad * bpe_in          # assume 2 buffers
    row_bytes = 2 * d_pad * bpe_in + 2 * d_pad * bpe_out   # Z + out, dbl-buffered
    resident_ok = (w_resident_bytes + 128 * row_bytes) <= vmem_budget

    if resident_ok:
        tm = 128
        for cand in (512, 256):
            if w_resident_bytes + cand * row_bytes <= vmem_budget:
                tm = cand
                break
        if M <= tm:
            # Single block for small M; for mid-sized M expose >= 2 M-tiles so
            # both TensorCores (v7x megacore) get work.
            tm = M if M < 256 else _round_up(_cdiv(M, 2), 128)
        m_grid = _cdiv(M, tm)

        cost = pl.CostEstimate(
            flops=flops,
            transcendentals=0,
            bytes_accessed=(M * d_pad * bpe_in
                            + d_pad * d_pad * bpe_in
                            + M * d_pad * bpe_out),
        )
        out2d = pl.pallas_call(
            _fused_kernel,
            out_shape=jax.ShapeDtypeStruct((M, d_pad), out_dtype),
            grid=(m_grid,),
            in_specs=[
                smem_spec,                                          # lambd/2
                pl.BlockSpec((tm, d_pad), lambda i: (i, 0)),        # Z rows
                pl.BlockSpec((d_pad, d_pad), lambda i: (0, 0)),     # W resident
            ],
            out_specs=pl.BlockSpec((tm, d_pad), lambda i: (i, 0)),
            compiler_params=pltpu.CompilerParams(
                dimension_semantics=("parallel",),
                vmem_limit_bytes=vmem_limit,
            ),
            cost_estimate=cost,
        )(half_lambd, z2d, w_p)

    # ---- Path B: stream W, tile K (weight too large for VMEM) --------------
    else:
        tn = min(512, d_pad)
        tm = 512
        if M <= tm:
            tm = M if M < 256 else _round_up(_cdiv(M, 2), 128)

        # Largest K tile that (a) divides d_pad (zero padding only at the real
        # feature boundary) and (b) fits the VMEM budget with double-buffered
        # Z/W slabs, double-buffered output and the f32 accumulator scratch.
        fixed_bytes = 2 * tm * tn * bpe_out + tm * tn * 4
        tk = 128
        for f in range(1, d_pad // 128 + 1):
            if d_pad % f != 0:
                continue
            cand = d_pad // f
            if cand % 128 != 0:
                continue
            if fixed_bytes + 2 * (tm + tn) * cand * bpe_in <= vmem_budget:
                tk = cand
                break
        k_grid = d_pad // tk
        m_grid = _cdiv(M, tm)
        n_grid = _cdiv(d_pad, tn)

        cost = pl.CostEstimate(
            flops=flops,
            transcendentals=0,
            bytes_accessed=(n_grid * M * d_pad * bpe_in          # Z re-read per N tile
                            + m_grid * d_pad * d_pad * bpe_in    # W re-read per M tile
                            + M * d_pad * bpe_out),
        )

        if k_grid == 1:
            # Single K pass: fused kernel, no accumulator read-modify-write.
            out2d = pl.pallas_call(
                _fused_kernel,
                out_shape=jax.ShapeDtypeStruct((M, d_pad), out_dtype),
                grid=(m_grid, n_grid),
                in_specs=[
                    smem_spec,
                    pl.BlockSpec((tm, d_pad), lambda i, j: (i, 0)),
                    pl.BlockSpec((tn, d_pad), lambda i, j: (j, 0)),
                ],
                out_specs=pl.BlockSpec((tm, tn), lambda i, j: (i, j)),
                compiler_params=pltpu.CompilerParams(
                    dimension_semantics=("parallel", "parallel"),
                    vmem_limit_bytes=vmem_limit,
                ),
                cost_estimate=cost,
            )(half_lambd, z2d, w_p)
        else:
            out2d = pl.pallas_call(
                _acc_kernel,
                out_shape=jax.ShapeDtypeStruct((M, d_pad), out_dtype),
                grid=(m_grid, n_grid, k_grid),
                in_specs=[
                    smem_spec,
                    pl.BlockSpec((tm, tk), lambda i, j, k: (i, k)),
                    pl.BlockSpec((tn, tk), lambda i, j, k: (j, k)),
                ],
                out_specs=pl.BlockSpec((tm, tn), lambda i, j, k: (i, j)),
                scratch_shapes=[pltpu.VMEM((tm, tn), jnp.float32)],
                compiler_params=pltpu.CompilerParams(
                    dimension_semantics=("parallel", "parallel", "arbitrary"),
                    vmem_limit_bytes=vmem_limit,
                ),
                cost_estimate=cost,
            )(half_lambd, z2d, w_p)

    if d_pad != dim:
        out2d = out2d[:, :dim]
    return out2d.reshape(orig_shape)


def kaiming_uniform(key, dim):
    # matches torch.nn.init.kaiming_uniform_ defaults:
    # gain = sqrt(2), bound = gain * sqrt(3 / fan_in) = sqrt(6 / fan_in)
    bound = (6.0 / dim) ** 0.5
    return jax.random.uniform(
        key, (dim, dim), dtype=jnp.float32, minval=-bound, maxval=bound
    )


if __name__ == "__main__":
    key = jax.random.PRNGKey(0)
    k_w, k_z = jax.random.split(key)

    batch, seq, dim = 2, 8, 32
    lambd = 0.1

    weight = kaiming_uniform(k_w, dim)
    z_half = jax.random.normal(k_z, (batch, seq, dim), dtype=jnp.float32)

    # f32 path (matches the PyTorch module numerics)
    out = jax.block_until_ready(mlp_encode_old(z_half, weight, lambd))
    ref = jnp.maximum(lambd / 2.0 + z_half @ weight.T, 0.0)
    assert out.shape == (batch, seq, dim)
    assert jnp.allclose(out, ref, atol=1e-5, rtol=1e-5)

    # bf16 fast path (MXU-native inputs, f32 accumulate/epilogue) — looser tol
    out_bf16 = jax.block_until_ready(
        mlp_encode_old(z_half, weight, lambd, use_bf16=True)
    )
    assert jnp.allclose(out_bf16, ref, atol=5e-2, rtol=5e-2)

    print("KERNEL_OK")
</pallas_src>

<mosaic_0001>
module attributes {stable_mosaic.version = 11 : i64} {
  func.func @_fused_kernel(%arg0: i32, %arg1: memref<1xf32, #tpu.memory_space<smem>>, %arg2: memref<16x128xf32, #tpu.memory_space<vmem>>, %arg3: memref<128x128xf32, #tpu.memory_space<vmem>>, %arg4: memref<16x128xf32, #tpu.memory_space<vmem>>) attributes {dimension_semantics = [#tpu.dimension_semantics<parallel>], iteration_bounds = array<i64: 1>, scalar_prefetch = 0 : i64, scratch_operands = 0 : i64, tpu.core_type = #tpu.core_type<tc>, window_params = [{transform_indices = @transform_0, window_bounds = array<i64: 1>}, {transform_indices = @transform_1, window_bounds = array<i64: 16, 128>}, {pipeline_mode = #tpu.pipeline_mode<synchronous>, transform_indices = @transform_2, window_bounds = array<i64: 128, 128>}, {transform_indices = @transform_3, window_bounds = array<i64: 16, 128>}]} {
    %c0 = arith.constant 0 : index
    %c0_0 = arith.constant 0 : index
    %0 = vector.load %arg2[%c0, %c0_0] : memref<16x128xf32, #tpu.memory_space<vmem>>, vector<16x128xf32>
    %c0_1 = arith.constant 0 : index
    %c0_2 = arith.constant 0 : index
    %1 = vector.load %arg3[%c0_1, %c0_2] : memref<128x128xf32, #tpu.memory_space<vmem>>, vector<128x128xf32>
    %cst = arith.constant dense<0.000000e+00> : vector<16x128xf32>
    %2 = tpu.matmul %0, %1, %cst {dimension_numbers = #tpu.dot_dimension_numbers<[1], [1], [0], [0], [0, 0, 1, 0], [], []>} : vector<16x128xf32>, vector<128x128xf32>, vector<16x128xf32> -> vector<16x128xf32>
    %c0_3 = arith.constant 0 : index
    %3 = memref.load %arg1[%c0_3] : memref<1xf32, #tpu.memory_space<smem>>
    %4 = vector.broadcast %3 : f32 to vector<16x128xf32>
    %5 = arith.addf %2, %4 : vector<16x128xf32>
    %cst_4 = arith.constant 0.000000e+00 : f32
    %6 = vector.broadcast %cst_4 : f32 to vector<16x128xf32>
    %7 = arith.maximumf %5, %6 : vector<16x128xf32>
    %c0_5 = arith.constant 0 : index
    %c0_6 = arith.constant 0 : index
    %8 = vector.load %arg4[%c0_5, %c0_6] : memref<16x128xf32, #tpu.memory_space<vmem>>, vector<16x128xf32>
    tpu.vector_store %arg4[%c0_5, %c0_6], %7 {strides = array<i32>} : memref<16x128xf32, #tpu.memory_space<vmem>>, vector<16x128xf32>,
    return
  }
  func.func @transform_0(%arg0: i32) -> i32 {
    %c0_i32 = arith.constant 0 : i32
    %c0_i32_0 = arith.constant 0 : i32
    return %c0_i32 : i32
  }
  func.func @transform_1(%arg0: i32) -> (i32, i32) {
    %c0_i32 = arith.constant 0 : i32
    %c0_i32_0 = arith.constant 0 : i32
    return %arg0, %c0_i32 : i32, i32
  }
  func.func @transform_2(%arg0: i32) -> (i32, i32) {
    %c0_i32 = arith.constant 0 : i32
    %c0_i32_0 = arith.constant 0 : i32
    %c0_i32_1 = arith.constant 0 : i32
    return %c0_i32, %c0_i32_0 : i32, i32
  }
  func.func @transform_3(%arg0: i32) -> (i32, i32) {
    %c0_i32 = arith.constant 0 : i32
    %c0_i32_0 = arith.constant 0 : i32
    return %arg0, %c0_i32 : i32, i32
  }
}

</mosaic_0001>

<llo_original>
// kernel: mlp_encode_old.1
$region0: #{mlp_encode_old.1}
  #allocation0 [shape = 'u32[]', space=smem, size = 0x4, offset = 0x4, fixed_abs, tag = 'smem constant byte address 0x4 - core index']
  #allocation1 [shape = 'u32[144,128]{1,0:T(1,128)}', space=vmem, size = 0x12000, scoped, tag = 'internal scratch']
  #allocation2 [shape = 'f32[1]{0:T(128)S(6)}', space=smem, size = 0x200, scoped, tag = 'scoped memory for mlp_encode_old.1']
  %s0 = inlined_call_operand.<no memory space> [shape: f32[1], index: 0, kind: input, shape index: {}]
  %s1 = inlined_call_operand.vmem [shape: f32[16,128], index: 1, kind: input, shape index: {}]
  %s2 = inlined_call_operand.vmem [shape: f32[128,128], index: 2, kind: input, shape index: {}]
  %s3 = inlined_call_operand.vmem [shape: f32[16,128], index: 3, kind: output, shape index: {}]
  %s4 = sld [smem:[#allocation0]]
  $region22: #{mlp_encode_old.1} parent=0
    _
  %s6 = ssub.s32 1, %s4
  %s7 = scalar_select 0, %s6, %s4
  %8 = sst [smem:[#allocation2]] %s0
  // Predicated region
  $region2: #{mlp_encode_old.1} parent=0 // pred_check
    _
  $region3: #{mlp_encode_old.1} parent=0 // pred_check_branch
    %10 = sbr.rel (0) target = $region5
  $region4: #{mlp_encode_old.1} parent=0 // pred_region
    _
  $region5: #{mlp_encode_old.1} parent=0 // pred_fallthru
    _
  // Predicated region
  $region6: #{mlp_encode_old.1} parent=0 // pred_check
    _
  $region7: #{mlp_encode_old.1} parent=0 // pred_check_branch
    %12 = sbr.rel (0) target = $region9
  $region8: #{mlp_encode_old.1} parent=0 // pred_region
    _
  $region9: #{mlp_encode_old.1} parent=0 // pred_fallthru
    _
  // Predicated region
  $region10: #{mlp_encode_old.1} parent=0 // pred_check
    _
  $region11: #{mlp_encode_old.1} parent=0 // pred_check_branch
    %14 = sbr.rel (0) target = $region13
  $region12: #{mlp_encode_old.1} parent=0 // pred_region
    _
  $region13: #{mlp_encode_old.1} parent=0 // pred_fallthru
    _
  %v15 = vld [vmem:[%s1] sm:$0xff]
  %v16 = vld [vmem:[%s1 + $0x8] sm:$0xff]
  %v17 = vld [vmem:[%s2] sm:$0xff]
  %v18 = vld [vmem:[%s2 + $0x8] sm:$0xff]
  %v19 = vld [vmem:[%s2 + $0x10] sm:$0xff]
  %v20 = vld [vmem:[%s2 + $0x18] sm:$0xff]
  %v21 = vld [vmem:[%s2 + $0x20] sm:$0xff]
  %v22 = vld [vmem:[%s2 + $0x28] sm:$0xff]
  %v23 = vld [vmem:[%s2 + $0x30] sm:$0xff]
  %v24 = vld [vmem:[%s2 + $0x38] sm:$0xff]
  %v25 = vld [vmem:[%s2 + $0x40] sm:$0xff]
  %v26 = vld [vmem:[%s2 + $0x48] sm:$0xff]
  %v27 = vld [vmem:[%s2 + $0x50] sm:$0xff]
  %v28 = vld [vmem:[%s2 + $0x58] sm:$0xff]
  %v29 = vld [vmem:[%s2 + $0x60] sm:$0xff]
  %v30 = vld [vmem:[%s2 + $0x68] sm:$0xff]
  %v31 = vld [vmem:[%s2 + $0x70] sm:$0xff]
  %v32 = vld [vmem:[%s2 + $0x78] sm:$0xff]
  %s33 = sld [smem:[#allocation2]]
  %v34 = vstv %s33
  %35 = vmatprep.subr.mxu0 0.0
  %36 = vmatpush1.xpose.msra.mxu0 %v17
  %37 = vmatprep.subr.mxu0 0.0
  %38 = vmatpush1.xpose.msra.mxu0 %v18
  %39 = vmatprep.subr.mxu0 0.0
  %40 = vmatpush1.xpose.msra.mxu0 %v19
  %41 = vmatprep.subr.mxu0 0.0
  %42 = vmatpush1.xpose.msra.mxu0 %v20
  %43 = vmatprep.subr.mxu0 0.0
  %44 = vmatpush1.xpose.msra.mxu0 %v21
  %45 = vmatprep.subr.mxu0 0.0
  %46 = vmatpush1.xpose.msra.mxu0 %v22
  %47 = vmatprep.subr.mxu0 0.0
  %48 = vmatpush1.xpose.msra.mxu0 %v23
  %49 = vmatprep.subr.mxu0 0.0
  %50 = vmatpush1.xpose.msra.mxu0 %v24
  %51 = vmatprep.subr.mxu0 0.0
  %52 = vmatpush1.xpose.msra.mxu0 %v25
  %53 = vmatprep.subr.mxu0 0.0
  %54 = vmatpush1.xpose.msra.mxu0 %v26
  %55 = vmatprep.subr.mxu0 0.0
  %56 = vmatpush1.xpose.msra.mxu0 %v27
  %57 = vmatprep.subr.mxu0 0.0
  %58 = vmatpush1.xpose.msra.mxu0 %v28
  %59 = vmatprep.subr.mxu0 0.0
  %60 = vmatpush1.xpose.msra.mxu0 %v29
  %61 = vmatprep.subr.mxu0 0.0
  %62 = vmatpush1.xpose.msra.mxu0 %v30
  %63 = vmatprep.subr.mxu0 0.0
  %64 = vmatpush1.xpose.msra.mxu0 %v31
  %65 = vmatprep.subr.mxu0 0.0
  %66 = vmatpush1.xpose.msra.mxu0 %v32
  %67 = vmatprep.subr.mxu0 0.0
  %68 = vmatpush1.xpose.msra.mxu0 0.0
  %69 = vmatprep.subr.mxu0 0.0
  %70 = vmatpush1.xpose.msra.mxu0 0.0
  %71 = vmatprep.subr.mxu0 0.0
  %72 = vmatpush1.xpose.msra.mxu0 0.0
  %73 = vmatprep.subr.mxu0 0.0
  %74 = vmatpush1.xpose.msra.mxu0 0.0
  %75 = vmatprep.subr.mxu0 0.0
  %76 = vmatpush1.xpose.msra.mxu0 0.0
  %77 = vmatprep.subr.mxu0 0.0
  %78 = vmatpush1.xpose.msra.mxu0 0.0
  %79 = vmatprep.subr.mxu0 0.0
  %80 = vmatpush1.xpose.msra.mxu0 0.0
  %81 = vmatprep.subr.mxu0 0.0
  %82 = vmatpush1.xpose.msra.mxu0 0.0
  %83 = vmatprep.subr.mxu0 0.0
  %84 = vmatpush1.xpose.msra.mxu0 0.0
  %85 = vmatprep.subr.mxu0 0.0
  %86 = vmatpush1.xpose.msra.mxu0 0.0
  %87 = vmatprep.subr.mxu0 0.0
  %88 = vmatpush1.xpose.msra.mxu0 0.0
  %89 = vmatprep.subr.mxu0 0.0
  %90 = vmatpush1.xpose.msra.mxu0 0.0
  %91 = vmatprep.subr.mxu0 0.0
  %92 = vmatpush1.xpose.msra.mxu0 0.0
  %93 = vmatprep.subr.mxu0 0.0
  %94 = vmatpush1.xpose.msra.mxu0 0.0
  %95 = vmatprep.subr.mxu0 0.0
  %96 = vmatpush1.xpose.msra.mxu0 0.0
  %97 = vmatprep.subr.mxu0 0.0
  %98 = vmatpush1.xpose.msra.mxu0 0.0
  %99 = vmatprep.mubr.f32.mxu0 0.0
  %100 = vmatmul.mubr.f32.gmra.mrb[0].mxu0 %v15
  %v101 = vpop.f32.mrb[0].mxu0
  %v102 = vadd.f32 %v34, %v101
  %v103 = vpop.f32.mrb[0].mxu0
  %104 = vmatprep.mubr.f32.mxu0 0.0
  %105 = vmatmul.mubr.f32.gmra.mrb[0].mxu0 %v16
  %v106 = vpop.f32.mrb[0].mxu0
  %v107 = vadd.f32 %v34, %v106
  %v108 = vpop.f32.mrb[0].mxu0
  %109 = vdwg.mxu0
  %v110 = vmax.f32 %v102, 0.0
  %v111 = vmax.f32 %v107, 0.0
  %112 = vst [vmem:[%s3] sm:$0xff] %v110
  %113 = vst [vmem:[%s3 + $0x8] sm:$0xff] %v111
  // Predicated region
  $region14: #{mlp_encode_old.1} parent=0 // pred_check
    _
  $region15: #{mlp_encode_old.1} parent=0 // pred_check_branch
    %115 = sbr.rel (0) target = $region17
  $region16: #{mlp_encode_old.1} parent=0 // pred_region
    _
  $region17: #{mlp_encode_old.1} parent=0 // pred_fallthru
    _
  // Predicated region
  $region18: #{mlp_encode_old.1} parent=0 // pred_check
    _
  $region19: #{mlp_encode_old.1} parent=0 // pred_check_branch
    %117 = sbr.rel (0) target = $region21
  $region20: #{mlp_encode_old.1} parent=0 // pred_region
    _
  $region21: #{mlp_encode_old.1} parent=0 // pred_fallthru
    _

</llo_original>
